<compile_context>
chip_gen: v5e
topology: v5e:2x2
jax: 0.10.0
libtpu: 0.0.40
codegen_flags: <defaults>
</compile_context>

<pallas_src>
import math

import jax
import jax.numpy as jnp
from jax.experimental import pallas as pl
from jax.experimental.pallas import tpu as pltpu

# ---- synthetic model hyper-parameters (mirror the module's __init__) --------
READER_COUNT = 64      # reader_count
ARTICLE_COUNT = 96     # article_count
FACTORS = 32           # factors

_LANE = 128            # TPU lane width


def mf_score_kernel(idx_ref, tab_ref, out_ref):
    """scores[b] = sum_f u_aug[f, user[b]] * i_aug[f, item[b]]  (biases folded in).

    idx_ref : (2, TB) int32  -- row 0 = user id, row 1 = item id + (R+1)
    tab_ref : (2*Fp, R+1+A+1) block-diagonal augmented table
    out_ref : (1, TB) f32
    """
    fp = tab_ref.shape[0] // 2       # padded augmented factor count
    rows_total = tab_ref.shape[1]    # (R+1) + (A+1)
    tb = idx_ref.shape[1]            # batch tile (lanes)

    idx = idx_ref[...]               # (2, TB) int32, batch on lanes
    u_idx = idx[0:1, :]              # (1, TB)
    i_idx = idx[1:2, :]              # (1, TB), already offset by R+1

    # ONE shared iota; compare -> convert (no select) builds the fused one-hot:
    # column b has a 1 at row user[b] and a 1 at row (R+1)+item[b].
    rows = jax.lax.broadcasted_iota(jnp.int32, (rows_total, tb), 0)
    onehot = ((rows == u_idx) | (rows == i_idx)).astype(tab_ref.dtype)

    # One block-diagonal gather matmul -> (2*Fp, TB): top half = gathered user
    # columns, bottom half = gathered item columns (biases folded into tables).
    g = jnp.dot(tab_ref[...], onehot, preferred_element_type=jnp.float32)

    # Dot product + both biases in one sublane reduction -> lane-dense (1, TB).
    out_ref[...] = jnp.sum(g[:fp, :] * g[fp:, :], axis=0, keepdims=True)


def _block_diag_table(user_emb, item_emb, user_bias, item_bias,
                      dtype=jnp.float32):
    """Fold biases into the factor tables and stack them block-diagonally."""
    r1, f = user_emb.shape
    a1 = item_emb.shape[0]
    f2 = f + 2
    fp = 8 * pl.cdiv(f2, 8)          # pad rows to a sublane multiple -> aligned halves
    pad_u = jnp.zeros((r1, fp - f2), jnp.float32)
    pad_i = jnp.zeros((a1, fp - f2), jnp.float32)
    ones_u = jnp.ones((r1, 1), jnp.float32)
    ones_i = jnp.ones((a1, 1), jnp.float32)
    # user row: [factors | user_bias | 1 | 0pad]; item row: [factors | 1 | item_bias | 0pad]
    u_aug = jnp.concatenate([user_emb, user_bias, ones_u, pad_u], axis=1).T  # (Fp, R+1)
    i_aug = jnp.concatenate([item_emb, ones_i, item_bias, pad_i], axis=1).T  # (Fp, A+1)
    top = jnp.concatenate([u_aug, jnp.zeros((fp, a1), jnp.float32)], axis=1)
    bot = jnp.concatenate([jnp.zeros((fp, r1), jnp.float32), i_aug], axis=1)
    return jnp.concatenate([top, bot], axis=0).astype(dtype)    # (2*Fp, R+1+A+1)


def _pick_tile(b):
    """Lane-aligned tile from {128, 256} minimizing padding (ties -> larger tile)."""
    best = None
    for tb in (256, 128):
        padded = tb * pl.cdiv(max(b, 1), tb)
        if best is None or padded < best[1]:
            best = (tb, padded)
    return best


def mf_scores(user_emb, item_emb, user_bias, item_bias, user, item,
              table_dtype=jnp.float32):
    """Forward pass equivalent to the PyTorch Model.forward(user, item)."""
    r1 = user_emb.shape[0]
    b = user.shape[0]

    tab = _block_diag_table(user_emb, item_emb, user_bias, item_bias, table_dtype)
    two_fp, rows_total = tab.shape

    tb, padded = _pick_tile(b)

    # Pack (and offset) indices into a single (2, padded) int32 operand.
    # Padded lanes carry 0 and are sliced off after the call.
    idx = jnp.stack([user.astype(jnp.int32),
                     item.astype(jnp.int32) + r1], axis=0)       # (2, B)
    idx = jnp.pad(idx, ((0, 0), (0, padded - b)))

    cost = pl.CostEstimate(
        flops=2 * two_fp * rows_total * padded + 3 * (two_fp // 2) * padded,
        transcendentals=0,
        bytes_accessed=idx.size * 4 + padded * 4 + tab.size * tab.dtype.itemsize,
    )

    out = pl.pallas_call(
        mf_score_kernel,
        out_shape=jax.ShapeDtypeStruct((1, padded), jnp.float32),
        grid=(padded // tb,),
        in_specs=[
            pl.BlockSpec((2, tb), lambda i: (0, i)),              # packed indices
            pl.BlockSpec((two_fp, rows_total), lambda i: (0, 0)), # whole table, resident
        ],
        out_specs=pl.BlockSpec((1, tb), lambda i: (0, i)),
        compiler_params=pltpu.CompilerParams(
            dimension_semantics=("parallel",)),
        cost_estimate=cost,
    )(idx, tab)
    return out[0, :b]                                             # (B,)


def init_parameters(key):
    """uniform_(-stdv, stdv) with stdv = 1/sqrt(factors), like init_parameters."""
    stdv = 1.0 / math.sqrt(FACTORS)
    k1, k2, k3, k4 = jax.random.split(key, 4)
    user_emb = jax.random.uniform(
        k1, (READER_COUNT + 1, FACTORS), jnp.float32, -stdv, stdv)
    item_emb = jax.random.uniform(
        k2, (ARTICLE_COUNT + 1, FACTORS), jnp.float32, -stdv, stdv)
    user_bias = jax.random.uniform(
        k3, (READER_COUNT + 1, 1), jnp.float32, -stdv, stdv)
    item_bias = jax.random.uniform(
        k4, (ARTICLE_COUNT + 1, 1), jnp.float32, -stdv, stdv)
    return user_emb, item_emb, user_bias, item_bias


if __name__ == "__main__":
    key = jax.random.PRNGKey(0)
    kp, ku, ki = jax.random.split(key, 3)

    user_emb, item_emb, user_bias, item_bias = init_parameters(kp)

    B = 8  # batch of (user, item) pairs
    user = jax.random.randint(ku, (B,), 0, READER_COUNT + 1, dtype=jnp.int32)
    item = jax.random.randint(ki, (B,), 0, ARTICLE_COUNT + 1, dtype=jnp.int32)

    scores = jax.jit(mf_scores)(user_emb, item_emb, user_bias, item_bias, user, item)
    scores = jax.block_until_ready(scores)

    # pure-JAX reference of the same forward pass
    ref = (
        jnp.sum(user_emb[user] * item_emb[item], axis=1)
        + user_bias[user][:, 0]
        + item_bias[item][:, 0]
    )
    assert scores.shape == (B,)
    assert jnp.allclose(scores, ref, atol=1e-5, rtol=1e-5)

    print("KERNEL_OK")
</pallas_src>

<mosaic_0001>
module attributes {stable_mosaic.version = 11 : i64} {
  func.func @mf_score_kernel(%arg0: i32, %arg1: memref<2x128xi32, #tpu.memory_space<vmem>>, %arg2: memref<80x162xf32, #tpu.memory_space<vmem>>, %arg3: memref<1x128xf32, #tpu.memory_space<vmem>>) attributes {dimension_semantics = [#tpu.dimension_semantics<parallel>], iteration_bounds = array<i64: 1>, scalar_prefetch = 0 : i64, scratch_operands = 0 : i64, tpu.core_type = #tpu.core_type<tc>, window_params = [{transform_indices = @transform_0, window_bounds = array<i64: 2, 128>}, {pipeline_mode = #tpu.pipeline_mode<synchronous>, transform_indices = @transform_1, window_bounds = array<i64: 80, 162>}, {transform_indices = @transform_2, window_bounds = array<i64: 1, 128>}]} {
    %c0 = arith.constant 0 : index
    %c0_0 = arith.constant 0 : index
    %0 = vector.load %arg1[%c0, %c0_0] : memref<2x128xi32, #tpu.memory_space<vmem>>, vector<2x128xi32>
    %1 = vector.extract_strided_slice %0 {offsets = [0, 0], sizes = [1, 128], strides = [1, 1]} : vector<2x128xi32> to vector<1x128xi32>
    %2 = vector.extract_strided_slice %0 {offsets = [1, 0], sizes = [1, 128], strides = [1, 1]} : vector<2x128xi32> to vector<1x128xi32>
    %3 = tpu.iota {dimensions = array<i32: 0>} : vector<162x128xi32>
    %4 = vector.broadcast %1 : vector<1x128xi32> to vector<162x128xi32>
    %5 = arith.cmpi eq, %3, %4 : vector<162x128xi32>
    %6 = vector.broadcast %2 : vector<1x128xi32> to vector<162x128xi32>
    %7 = arith.cmpi eq, %3, %6 : vector<162x128xi32>
    %8 = arith.ori %5, %7 : vector<162x128xi1>
    %9 = arith.extui %8 : vector<162x128xi1> to vector<162x128xi32>
    %10 = arith.sitofp %9 : vector<162x128xi32> to vector<162x128xf32>
    %c0_1 = arith.constant 0 : index
    %c0_2 = arith.constant 0 : index
    %11 = vector.load %arg2[%c0_1, %c0_2] : memref<80x162xf32, #tpu.memory_space<vmem>>, vector<80x162xf32>
    %cst = arith.constant dense<0.000000e+00> : vector<80x128xf32>
    %12 = tpu.matmul %11, %10, %cst {dimension_numbers = #tpu.dot_dimension_numbers<[1], [0], [0], [1], [0, 0, 1, 1], [], []>} : vector<80x162xf32>, vector<162x128xf32>, vector<80x128xf32> -> vector<80x128xf32>
    %13 = vector.extract_strided_slice %12 {offsets = [0, 0], sizes = [40, 128], strides = [1, 1]} : vector<80x128xf32> to vector<40x128xf32>
    %14 = vector.extract_strided_slice %12 {offsets = [40, 0], sizes = [40, 128], strides = [1, 1]} : vector<80x128xf32> to vector<40x128xf32>
    %15 = arith.mulf %13, %14 : vector<40x128xf32>
    %cst_3 = arith.constant dense<0.000000e+00> : vector<128xf32>
    %16 = vector.multi_reduction <add>, %15, %cst_3 [0] : vector<40x128xf32> to vector<128xf32>
    %17 = vector.shape_cast %16 : vector<128xf32> to vector<1x128xf32>
    %c0_4 = arith.constant 0 : index
    %c0_5 = arith.constant 0 : index
    %18 = vector.load %arg3[%c0_4, %c0_5] : memref<1x128xf32, #tpu.memory_space<vmem>>, vector<1x128xf32>
    tpu.vector_store %arg3[%c0_4, %c0_5], %17 {strides = array<i32>} : memref<1x128xf32, #tpu.memory_space<vmem>>, vector<1x128xf32>,
    return
  }
  func.func @transform_0(%arg0: i32) -> (i32, i32) {
    %c0_i32 = arith.constant 0 : i32
    %c0_i32_0 = arith.constant 0 : i32
    return %c0_i32, %arg0 : i32, i32
  }
  func.func @transform_1(%arg0: i32) -> (i32, i32) {
    %c0_i32 = arith.constant 0 : i32
    %c0_i32_0 = arith.constant 0 : i32
    %c0_i32_1 = arith.constant 0 : i32
    return %c0_i32, %c0_i32_0 : i32, i32
  }
  func.func @transform_2(%arg0: i32) -> (i32, i32) {
    %c0_i32 = arith.constant 0 : i32
    %c0_i32_0 = arith.constant 0 : i32
    return %c0_i32, %arg0 : i32, i32
  }
}

</mosaic_0001>

<llo_original>
// kernel: mf_scores.1
$region0: #{mf_scores.1}
  #allocation0 [shape = 'u32[]', space=smem, size = 0x4, offset = 0x4, fixed_abs, tag = 'smem constant byte address 0x4 - core index']
  #allocation1 [shape = 'u32[72,128]{1,0:T(1,128)}', space=vmem, size = 0x9000, scoped, tag = 'internal scratch']
  %s0 = inlined_call_operand.vmem [shape: s32[2,128], index: 0, kind: input, shape index: {}]
  %s1 = inlined_call_operand.vmem [shape: f32[80,162], index: 1, kind: input, shape index: {}]
  %s2 = inlined_call_operand.vmem [shape: f32[1,128], index: 2, kind: output, shape index: {}]
  %s3 = sld [smem:[#allocation0]]
  $region18: #{mf_scores.1} parent=0
    _
  %s5 = ssub.s32 1, %s3
  %s6 = scalar_select 0, %s5, %s3
  // Predicated region
  $region2: #{mf_scores.1} parent=0 // pred_check
    _
  $region3: #{mf_scores.1} parent=0 // pred_check_branch
    %8 = sbr.rel (0) target = $region5
  $region4: #{mf_scores.1} parent=0 // pred_region
    _
  $region5: #{mf_scores.1} parent=0 // pred_fallthru
    _
  // Predicated region
  $region6: #{mf_scores.1} parent=0 // pred_check
    _
  $region7: #{mf_scores.1} parent=0 // pred_check_branch
    %10 = sbr.rel (0) target = $region9
  $region8: #{mf_scores.1} parent=0 // pred_region
    _
  $region9: #{mf_scores.1} parent=0 // pred_fallthru
    _
  %v11 = vld [vmem:[%s0] sm:$0x3]
  %v12 = vlaneseq
  %v13 = vshrl.u32 %v12, 7
  %v14 = vadd.s32 %v13, 8
  %v15 = vadd.s32 %v13, 16
  %v16 = vadd.s32 %v13, 24
  %v17 = vadd.s32 %v13, 32
  %v18 = vadd.s32 %v13, 40
  %v19 = vadd.s32 %v13, 48
  %v20 = vadd.s32 %v13, 56
  %v21 = vadd.s32 %v13, 64
  %v22 = vadd.s32 %v13, 72
  %v23 = vadd.s32 %v13, 80
  %v24 = vadd.s32 %v13, 88
  %v25 = vadd.s32 %v13, 96
  %v26 = vadd.s32 %v13, 104
  %v27 = vadd.s32 %v13, 112
  %v28 = vadd.s32 %v13, 120
  %v29 = vadd.s32 %v13, 128
  %v30 = vadd.s32 %v13, 136
  %v31 = vadd.s32 %v13, 144
  %v32 = vadd.s32 %v13, 152
  %v33 = vadd.s32 %v13, 160
  %v34 = vperm.slane %v11, 0
  %vm35 = vcmp.eq.s32.totalorder %v13, %v34
  %vm36 = vcmp.eq.s32.totalorder %v14, %v34
  %vm37 = vcmp.eq.s32.totalorder %v15, %v34
  %vm38 = vcmp.eq.s32.totalorder %v16, %v34
  %vm39 = vcmp.eq.s32.totalorder %v17, %v34
  %vm40 = vcmp.eq.s32.totalorder %v18, %v34
  %vm41 = vcmp.eq.s32.totalorder %v19, %v34
  %vm42 = vcmp.eq.s32.totalorder %v20, %v34
  %vm43 = vcmp.eq.s32.totalorder %v21, %v34
  %vm44 = vcmp.eq.s32.totalorder %v22, %v34
  %vm45 = vcmp.eq.s32.totalorder %v23, %v34
  %vm46 = vcmp.eq.s32.totalorder %v24, %v34
  %vm47 = vcmp.eq.s32.totalorder %v25, %v34
  %vm48 = vcmp.eq.s32.totalorder %v26, %v34
  %vm49 = vcmp.eq.s32.totalorder %v27, %v34
  %vm50 = vcmp.eq.s32.totalorder %v28, %v34
  %vm51 = vcmp.eq.s32.totalorder %v29, %v34
  %vm52 = vcmp.eq.s32.totalorder %v30, %v34
  %vm53 = vcmp.eq.s32.totalorder %v31, %v34
  %vm54 = vcmp.eq.s32.totalorder %v32, %v34
  %vm55 = vcmp.eq.s32.totalorder %v33, %v34
  %v56 = vperm.slane %v11, 1
  %vm57 = vcmp.eq.s32.totalorder %v13, %v56
  %vm58 = vcmp.eq.s32.totalorder %v14, %v56
  %vm59 = vcmp.eq.s32.totalorder %v15, %v56
  %vm60 = vcmp.eq.s32.totalorder %v16, %v56
  %vm61 = vcmp.eq.s32.totalorder %v17, %v56
  %vm62 = vcmp.eq.s32.totalorder %v18, %v56
  %vm63 = vcmp.eq.s32.totalorder %v19, %v56
  %vm64 = vcmp.eq.s32.totalorder %v20, %v56
  %vm65 = vcmp.eq.s32.totalorder %v21, %v56
  %vm66 = vcmp.eq.s32.totalorder %v22, %v56
  %vm67 = vcmp.eq.s32.totalorder %v23, %v56
  %vm68 = vcmp.eq.s32.totalorder %v24, %v56
  %vm69 = vcmp.eq.s32.totalorder %v25, %v56
  %vm70 = vcmp.eq.s32.totalorder %v26, %v56
  %vm71 = vcmp.eq.s32.totalorder %v27, %v56
  %vm72 = vcmp.eq.s32.totalorder %v28, %v56
  %vm73 = vcmp.eq.s32.totalorder %v29, %v56
  %vm74 = vcmp.eq.s32.totalorder %v30, %v56
  %vm75 = vcmp.eq.s32.totalorder %v31, %v56
  %vm76 = vcmp.eq.s32.totalorder %v32, %v56
  %vm77 = vcmp.eq.s32.totalorder %v33, %v56
  %vm78 = vmor %vm35, %vm57
  %vm79 = vmor %vm36, %vm58
  %vm80 = vmor %vm37, %vm59
  %vm81 = vmor %vm38, %vm60
  %vm82 = vmor %vm39, %vm61
  %vm83 = vmor %vm40, %vm62
  %vm84 = vmor %vm41, %vm63
  %vm85 = vmor %vm42, %vm64
  %vm86 = vmor %vm43, %vm65
  %vm87 = vmor %vm44, %vm66
  %vm88 = vmor %vm45, %vm67
  %vm89 = vmor %vm46, %vm68
  %vm90 = vmor %vm47, %vm69
  %vm91 = vmor %vm48, %vm70
  %vm92 = vmor %vm49, %vm71
  %vm93 = vmor %vm50, %vm72
  %vm94 = vmor %vm51, %vm73
  %vm95 = vmor %vm52, %vm74
  %vm96 = vmor %vm53, %vm75
  %vm97 = vmor %vm54, %vm76
  %vm98 = vmor %vm55, %vm77
  %v99 = vsel %vm78, 1, 0
  %v100 = vsel %vm79, 1, 0
  %v101 = vsel %vm80, 1, 0
  %v102 = vsel %vm81, 1, 0
  %v103 = vsel %vm82, 1, 0
  %v104 = vsel %vm83, 1, 0
  %v105 = vsel %vm84, 1, 0
  %v106 = vsel %vm85, 1, 0
  %v107 = vsel %vm86, 1, 0
  %v108 = vsel %vm87, 1, 0
  %v109 = vsel %vm88, 1, 0
  %v110 = vsel %vm89, 1, 0
  %v111 = vsel %vm90, 1, 0
  %v112 = vsel %vm91, 1, 0
  %v113 = vsel %vm92, 1, 0
  %v114 = vsel %vm93, 1, 0
  %v115 = vsel %vm94, 1, 0
  %v116 = vsel %vm95, 1, 0
  %v117 = vsel %vm96, 1, 0
  %v118 = vsel %vm97, 1, 0
  %v119 = vsel %vm98, 1, 0
  %v120 = vcvt.s32.f32 %v99
  %v121 = vcvt.s32.f32 %v100
  %v122 = vcvt.s32.f32 %v101
  %v123 = vcvt.s32.f32 %v102
  %v124 = vcvt.s32.f32 %v103
  %v125 = vcvt.s32.f32 %v104
  %v126 = vcvt.s32.f32 %v105
  %v127 = vcvt.s32.f32 %v106
  %v128 = vcvt.s32.f32 %v107
  %v129 = vcvt.s32.f32 %v108
  %v130 = vcvt.s32.f32 %v109
  %v131 = vcvt.s32.f32 %v110
  %v132 = vcvt.s32.f32 %v111
  %v133 = vcvt.s32.f32 %v112
  %v134 = vcvt.s32.f32 %v113
  %v135 = vcvt.s32.f32 %v114
  %v136 = vcvt.s32.f32 %v115
  %v137 = vcvt.s32.f32 %v116
  %v138 = vcvt.s32.f32 %v117
  %v139 = vcvt.s32.f32 %v118
  %v140 = vcvt.s32.f32 %v119
  %v141 = vld [vmem:[%s1] sm:$0xff]
  %v142 = vld [vmem:[%s1 + $0x8] sm:$0xff]
  %v143 = vld [vmem:[%s1 + $0x10] sm:$0xff]
  %v144 = vld [vmem:[%s1 + $0x18] sm:$0xff]
  %v145 = vld [vmem:[%s1 + $0x20] sm:$0xff]
  %v146 = vld [vmem:[%s1 + $0x28] sm:$0xff]
  %v147 = vld [vmem:[%s1 + $0x30] sm:$0xff]
  %v148 = vld [vmem:[%s1 + $0x38] sm:$0xff]
  %v149 = vld [vmem:[%s1 + $0x40] sm:$0xff]
  %v150 = vld [vmem:[%s1 + $0x48] sm:$0xff]
  %v151 = vld [vmem:[%s1 + $0x50] sm:$0xff]
  %v152 = vld [vmem:[%s1 + $0x58] sm:$0xff]
  %v153 = vld [vmem:[%s1 + $0x60] sm:$0xff]
  %v154 = vld [vmem:[%s1 + $0x68] sm:$0xff]
  %v155 = vld [vmem:[%s1 + $0x70] sm:$0xff]
  %v156 = vld [vmem:[%s1 + $0x78] sm:$0xff]
  %v157 = vld [vmem:[%s1 + $0x80] sm:$0xff]
  %v158 = vld [vmem:[%s1 + $0x88] sm:$0xff]
  %v159 = vld [vmem:[%s1 + $0x90] sm:$0xff]
  %v160 = vld [vmem:[%s1 + $0x98] sm:$0xff]
  %vm161 = vcmask 277504
  %v163 = vsel %vm161, %v142, 0
  %v166 = vsel %vm161, %v144, 0
  %v169 = vsel %vm161, %v146, 0
  %v172 = vsel %vm161, %v148, 0
  %v175 = vsel %vm161, %v150, 0
  %v178 = vsel %vm161, %v152, 0
  %v181 = vsel %vm161, %v154, 0
  %v184 = vsel %vm161, %v156, 0
  %v187 = vsel %vm161, %v158, 0
  %v190 = vsel %vm161, %v160, 0
  %vm192 = vcmask 1041408
  %v194 = vsel %vm192, %v140, 0
  %196 = vmatpush.msra.mxu0 %v135
  %197 = vmatpush.msra.mxu0 %v134
  %198 = vmatpush.msra.mxu0 %v133
  %199 = vmatpush.msra.mxu0 %v132
  %200 = vmatpush.msra.mxu0 %v131
  %201 = vmatpush.msra.mxu0 %v130
  %202 = vmatpush.msra.mxu0 %v129
  %203 = vmatpush.msra.mxu0 %v128
  %204 = vmatpush.msra.mxu0 %v127
  %205 = vmatpush.msra.mxu0 %v126
  %206 = vmatpush.msra.mxu0 %v125
  %207 = vmatpush.msra.mxu0 %v124
  %208 = vmatpush.msra.mxu0 %v123
  %209 = vmatpush.msra.mxu0 %v122
  %210 = vmatpush.msra.mxu0 %v121
  %211 = vmatpush.msra.mxu0 %v120
  %212 = vmatmul.f32.gmra.mxu0 %v141
  %v213 = vpop.f32.mrf.mxu0
  %v214 = vadd.f32 0.0, %v213
  %215 = vmatmul.f32.gmra.mxu0 %v143
  %v216 = vpop.f32.mrf.mxu0
  %v217 = vadd.f32 0.0, %v216
  %218 = vmatmul.f32.gmra.mxu0 %v145
  %v219 = vpop.f32.mrf.mxu0
  %v220 = vadd.f32 0.0, %v219
  %221 = vmatmul.f32.gmra.mxu0 %v147
  %v222 = vpop.f32.mrf.mxu0
  %v223 = vadd.f32 0.0, %v222
  %224 = vmatmul.f32.gmra.mxu0 %v149
  %v225 = vpop.f32.mrf.mxu0
  %v226 = vadd.f32 0.0, %v225
  %227 = vmatmul.f32.gmra.mxu0 %v151
  %v228 = vpop.f32.mrf.mxu0
  %v229 = vadd.f32 0.0, %v228
  %230 = vmatmul.f32.gmra.mxu0 %v153
  %v231 = vpop.f32.mrf.mxu0
  %v232 = vadd.f32 0.0, %v231
  %233 = vmatmul.f32.gmra.mxu0 %v155
  %v234 = vpop.f32.mrf.mxu0
  %v235 = vadd.f32 0.0, %v234
  %236 = vmatmul.f32.gmra.mxu0 %v157
  %v237 = vpop.f32.mrf.mxu0
  %v238 = vadd.f32 0.0, %v237
  %239 = vmatmul.f32.gmra.mxu0 %v159
  %v240 = vpop.f32.mrf.mxu0
  %v241 = vadd.f32 0.0, %v240
  %242 = vdwg.mxu0
  %243 = vmatpush.msra.mxu0 0.0
  %244 = vmatpush.msra.mxu0 0.0
  %245 = vmatpush.msra.mxu0 0.0
  %246 = vmatpush.msra.mxu0 0.0
  %247 = vmatpush.msra.mxu0 0.0
  %248 = vmatpush.msra.mxu0 0.0
  %249 = vmatpush.msra.mxu0 0.0
  %250 = vmatpush.msra.mxu0 0.0
  %251 = vmatpush.msra.mxu0 0.0
  %252 = vmatpush.msra.mxu0 0.0
  %253 = vmatpush.msra.mxu0 0.0
  %254 = vmatpush.msra.mxu0 %v194
  %255 = vmatpush.msra.mxu0 %v139
  %256 = vmatpush.msra.mxu0 %v138
  %257 = vmatpush.msra.mxu0 %v137
  %258 = vmatpush.msra.mxu0 %v136
  %259 = vmatmul.f32.gmra.mxu0 %v163
  %v260 = vpop.f32.mrf.mxu0
  %v261 = vadd.f32 %v214, %v260
  %262 = vmatmul.f32.gmra.mxu0 %v166
  %v263 = vpop.f32.mrf.mxu0
  %v264 = vadd.f32 %v217, %v263
  %265 = vmatmul.f32.gmra.mxu0 %v169
  %v266 = vpop.f32.mrf.mxu0
  %v267 = vadd.f32 %v220, %v266
  %268 = vmatmul.f32.gmra.mxu0 %v172
  %v269 = vpop.f32.mrf.mxu0
  %v270 = vadd.f32 %v223, %v269
  %271 = vmatmul.f32.gmra.mxu0 %v175
  %v272 = vpop.f32.mrf.mxu0
  %v273 = vadd.f32 %v226, %v272
  %274 = vmatmul.f32.gmra.mxu0 %v178
  %v275 = vpop.f32.mrf.mxu0
  %v276 = vadd.f32 %v229, %v275
  %277 = vmatmul.f32.gmra.mxu0 %v181
  %v278 = vpop.f32.mrf.mxu0
  %v279 = vadd.f32 %v232, %v278
  %280 = vmatmul.f32.gmra.mxu0 %v184
  %v281 = vpop.f32.mrf.mxu0
  %v282 = vadd.f32 %v235, %v281
  %283 = vmatmul.f32.gmra.mxu0 %v187
  %v284 = vpop.f32.mrf.mxu0
  %v285 = vadd.f32 %v238, %v284
  %286 = vmatmul.f32.gmra.mxu0 %v190
  %v287 = vpop.f32.mrf.mxu0
  %v288 = vadd.f32 %v241, %v287
  %289 = vdwg.mxu0
  %v290 = vmul.f32 %v261, %v276
  %v291 = vmul.f32 %v264, %v279
  %v292 = vmul.f32 %v267, %v282
  %v293 = vmul.f32 %v270, %v285
  %v294 = vmul.f32 %v273, %v288
  %v295 = vadd.f32 %v290, %v291
  %v296 = vadd.f32 %v295, %v292
  %v297 = vadd.f32 %v296, %v293
  %v298 = vadd.f32 %v297, %v294
  %v299 = vrot.slane %v298, 4
  %v300 = vadd.f32 %v298, %v299
  %v301 = vrot.slane %v300, 2
  %v302 = vadd.f32 %v300, %v301
  %v303 = vrot.slane %v302, 1
  %v304 = vadd.f32 %v302, %v303
  %305 = vst [vmem:[%s2] sm:$0x1] %v304
  // Predicated region
  $region10: #{mf_scores.1} parent=0 // pred_check
    _
  $region11: #{mf_scores.1} parent=0 // pred_check_branch
    %307 = sbr.rel (0) target = $region13
  $region12: #{mf_scores.1} parent=0 // pred_region
    _
  $region13: #{mf_scores.1} parent=0 // pred_fallthru
    _
  // Predicated region
  $region14: #{mf_scores.1} parent=0 // pred_check
    _
  $region15: #{mf_scores.1} parent=0 // pred_check_branch
    %309 = sbr.rel (0) target = $region17
  $region16: #{mf_scores.1} parent=0 // pred_region
    _
  $region17: #{mf_scores.1} parent=0 // pred_fallthru
    _

</llo_original>
